<compile_context>
chip_gen: v7x
topology: tpu7x:2x2x1
jax: 0.10.0
libtpu: 0.0.40
codegen_flags: <defaults>
</compile_context>

<pallas_src>
import jax
import jax.numpy as jnp
from jax.experimental import pallas as pl
from jax.experimental.pallas import tpu as pltpu


_IN = 3   # trunk input features
_H1 = 4   # head-1 output features
_H2 = 5   # head-2 output features

# Natural-layout batch tile.  Lane padding (3/4/5 -> 128 lanes) makes each
# (tb, feat) f32 block occupy tb*512 bytes in VMEM (~1.5 KiB/row for
# in + out1 + out2), so tb=8192 costs ~12 MiB per buffer set, ~24 MiB
# double-buffered -- within the scoped-VMEM cap requested below and safely
# under v7x's 64 MiB physical VMEM.
_TB_MAX = 8192
_VMEM_LIMIT_BYTES = 40 * 1024 * 1024


def _round_up(n, m):
    return ((n + m - 1) // m) * m


def _fused_heads_kernel(w1_ref, b1_ref, w2_ref, b2_ref, x_ref, o1_ref, o2_ref):
    """Single-pass fused trunk+heads on one row-major batch tile.

    x_ref : (tb, 3)  input tile (batch rows on the sublane axis)
    w1_ref: (3, 4)   effective head-1 weight  (constant-index resident block)
    b1_ref: (1, 4)   effective head-1 bias    (resident block)
    w2_ref: (3, 5)   effective head-2 weight  (resident block)
    b2_ref: (1, 5)   effective head-2 bias    (resident block)
    o1_ref: (tb, 4)  head-1 output tile
    o2_ref: (tb, 5)  head-2 output tile

    The K=3 contractions go to the idle MXU (f32 accumulation); the whole
    kernel remains HBM-DMA bound.
    """
    x = x_ref[...]
    o1_ref[...] = (jnp.dot(x, w1_ref[...], preferred_element_type=jnp.float32)
                   + b1_ref[...]).astype(o1_ref.dtype)
    o2_ref[...] = (jnp.dot(x, w2_ref[...], preferred_element_type=jnp.float32)
                   + b2_ref[...]).astype(o2_ref.dtype)


def multihead_forward(x, params):
    """x: (B, 3) float32.  Returns (head1 (B, 4), head2 (B, 5))."""
    w0, b0, w1, b1, w2, b2 = params
    B = x.shape[0]

    # Affine collapse (mathematically exact; no nonlinearity in between):
    #   head_k(x) = x @ (W0 @ Wk) + (b0 @ Wk + bk)
    w1_eff = w0 @ w1            # (3, 4)
    b1_eff = b0 @ w1 + b1       # (1, 4)
    w2_eff = w0 @ w2            # (3, 5)
    b2_eff = b0 @ w2 + b2       # (1, 5)

    # Batch tile: multiple of 8 sublanes; the last grid block may be partial
    # (OOB rows are garbage on read but never written back -- rows are
    # independent, no cross-row reduction).
    tb = min(_TB_MAX, _round_up(B, 8))
    grid = (pl.cdiv(B, tb),)

    h1, h2 = pl.pallas_call(
        _fused_heads_kernel,
        out_shape=(jax.ShapeDtypeStruct((B, _H1), jnp.float32),
                   jax.ShapeDtypeStruct((B, _H2), jnp.float32)),
        grid=grid,
        in_specs=[
            pl.BlockSpec((_IN, _H1), lambda i: (0, 0)),   # w1_eff (resident)
            pl.BlockSpec((1, _H1), lambda i: (0, 0)),     # b1_eff (resident)
            pl.BlockSpec((_IN, _H2), lambda i: (0, 0)),   # w2_eff (resident)
            pl.BlockSpec((1, _H2), lambda i: (0, 0)),     # b2_eff (resident)
            pl.BlockSpec((tb, _IN), lambda i: (i, 0)),    # x batch tile
        ],
        out_specs=(
            pl.BlockSpec((tb, _H1), lambda i: (i, 0)),    # head1 tile
            pl.BlockSpec((tb, _H2), lambda i: (i, 0)),    # head2 tile
        ),
        compiler_params=pltpu.CompilerParams(
            dimension_semantics=("parallel",),
            vmem_limit_bytes=_VMEM_LIMIT_BYTES),
    )(w1_eff, b1_eff, w2_eff, b2_eff, x)
    return h1, h2


def init_params(key):
    """Deterministic init matching torch.nn.Linear default:
    U(-1/sqrt(fan_in), 1/sqrt(fan_in)) for weight and bias.
    Weights stored as (fan_in, fan_out) (already transposed for x @ W)."""
    def linear(k, fan_in, fan_out):
        kw, kb = jax.random.split(k)
        bound = 1.0 / (fan_in ** 0.5)
        w = jax.random.uniform(kw, (fan_in, fan_out), jnp.float32, -bound, bound)
        b = jax.random.uniform(kb, (1, fan_out), jnp.float32, -bound, bound)
        return w, b

    k0, k1, k2 = jax.random.split(key, 3)
    w0, b0 = linear(k0, 3, 2)   # self._linear
    w1, b1 = linear(k1, 2, 4)   # self._head1
    w2, b2 = linear(k2, 2, 5)   # self._head2
    return (w0, b0, w1, b1, w2, b2)


def reference_forward(x, params):
    w0, b0, w1, b1, w2, b2 = params
    feat = x @ w0 + b0
    return feat @ w1 + b1, feat @ w2 + b2


if __name__ == "__main__":
    key = jax.random.PRNGKey(0)
    kp, kx1, kx2 = jax.random.split(key, 3)
    params = init_params(kp)

    # Small test (single grid block, tb == B).
    B = 8
    x = jax.random.normal(kx1, (B, 3), dtype=jnp.float32)
    h1, h2 = multihead_forward(x, params)
    jax.block_until_ready((h1, h2))
    r1, r2 = reference_forward(x, params)
    assert h1.shape == (B, _H1) and h2.shape == (B, _H2)
    assert jnp.allclose(h1, r1, atol=1e-5), "head1 mismatch (B=8)"
    assert jnp.allclose(h2, r2, atol=1e-5), "head2 mismatch (B=8)"

    # Larger, non-multiple batch: multi-block grid + partial last block.
    B2 = 20000
    x2 = jax.random.normal(kx2, (B2, 3), dtype=jnp.float32)
    g1, g2 = multihead_forward(x2, params)
    jax.block_until_ready((g1, g2))
    s1, s2 = reference_forward(x2, params)
    assert g1.shape == (B2, _H1) and g2.shape == (B2, _H2)
    assert jnp.allclose(g1, s1, atol=1e-5), "head1 mismatch (B=20000)"
    assert jnp.allclose(g2, s2, atol=1e-5), "head2 mismatch (B=20000)"

    print("KERNEL_OK")
</pallas_src>

<mosaic_0001>
module attributes {stable_mosaic.version = 11 : i64} {
  func.func @_fused_heads_kernel(%arg0: i32, %arg1: memref<3x4xf32, #tpu.memory_space<vmem>>, %arg2: memref<1x4xf32, #tpu.memory_space<vmem>>, %arg3: memref<3x5xf32, #tpu.memory_space<vmem>>, %arg4: memref<1x5xf32, #tpu.memory_space<vmem>>, %arg5: memref<8x3xf32, #tpu.memory_space<vmem>>, %arg6: memref<8x4xf32, #tpu.memory_space<vmem>>, %arg7: memref<8x5xf32, #tpu.memory_space<vmem>>) attributes {dimension_semantics = [#tpu.dimension_semantics<parallel>], iteration_bounds = array<i64: 1>, scalar_prefetch = 0 : i64, scratch_operands = 0 : i64, tpu.core_type = #tpu.core_type<tc>, window_params = [{pipeline_mode = #tpu.pipeline_mode<synchronous>, transform_indices = @transform_0, window_bounds = array<i64: 3, 4>}, {pipeline_mode = #tpu.pipeline_mode<synchronous>, transform_indices = @transform_1, window_bounds = array<i64: 1, 4>}, {pipeline_mode = #tpu.pipeline_mode<synchronous>, transform_indices = @transform_2, window_bounds = array<i64: 3, 5>}, {pipeline_mode = #tpu.pipeline_mode<synchronous>, transform_indices = @transform_3, window_bounds = array<i64: 1, 5>}, {transform_indices = @transform_4, window_bounds = array<i64: 8, 3>}, {transform_indices = @transform_5, window_bounds = array<i64: 8, 4>}, {transform_indices = @transform_6, window_bounds = array<i64: 8, 5>}]} {
    %c0 = arith.constant 0 : index
    %c0_0 = arith.constant 0 : index
    %0 = vector.load %arg5[%c0, %c0_0] : memref<8x3xf32, #tpu.memory_space<vmem>>, vector<8x3xf32>
    %c0_1 = arith.constant 0 : index
    %c0_2 = arith.constant 0 : index
    %1 = vector.load %arg1[%c0_1, %c0_2] : memref<3x4xf32, #tpu.memory_space<vmem>>, vector<3x4xf32>
    %cst = arith.constant dense<0.000000e+00> : vector<8x4xf32>
    %2 = tpu.matmul %0, %1, %cst {dimension_numbers = #tpu.dot_dimension_numbers<[1], [0], [0], [1], [0, 0, 1, 1], [], []>} : vector<8x3xf32>, vector<3x4xf32>, vector<8x4xf32> -> vector<8x4xf32>
    %c0_3 = arith.constant 0 : index
    %c0_4 = arith.constant 0 : index
    %3 = vector.load %arg2[%c0_3, %c0_4] : memref<1x4xf32, #tpu.memory_space<vmem>>, vector<1x4xf32>
    %4 = vector.broadcast %3 : vector<1x4xf32> to vector<8x4xf32>
    %5 = arith.addf %2, %4 : vector<8x4xf32>
    %c0_5 = arith.constant 0 : index
    %c0_6 = arith.constant 0 : index
    %6 = vector.load %arg6[%c0_5, %c0_6] : memref<8x4xf32, #tpu.memory_space<vmem>>, vector<8x4xf32>
    tpu.vector_store %arg6[%c0_5, %c0_6], %5 {strides = array<i32>} : memref<8x4xf32, #tpu.memory_space<vmem>>, vector<8x4xf32>,
    %c0_7 = arith.constant 0 : index
    %c0_8 = arith.constant 0 : index
    %7 = vector.load %arg3[%c0_7, %c0_8] : memref<3x5xf32, #tpu.memory_space<vmem>>, vector<3x5xf32>
    %cst_9 = arith.constant dense<0.000000e+00> : vector<8x5xf32>
    %8 = tpu.matmul %0, %7, %cst_9 {dimension_numbers = #tpu.dot_dimension_numbers<[1], [0], [0], [1], [0, 0, 1, 1], [], []>} : vector<8x3xf32>, vector<3x5xf32>, vector<8x5xf32> -> vector<8x5xf32>
    %c0_10 = arith.constant 0 : index
    %c0_11 = arith.constant 0 : index
    %9 = vector.load %arg4[%c0_10, %c0_11] : memref<1x5xf32, #tpu.memory_space<vmem>>, vector<1x5xf32>
    %10 = vector.broadcast %9 : vector<1x5xf32> to vector<8x5xf32>
    %11 = arith.addf %8, %10 : vector<8x5xf32>
    %c0_12 = arith.constant 0 : index
    %c0_13 = arith.constant 0 : index
    %12 = vector.load %arg7[%c0_12, %c0_13] : memref<8x5xf32, #tpu.memory_space<vmem>>, vector<8x5xf32>
    tpu.vector_store %arg7[%c0_12, %c0_13], %11 {strides = array<i32>} : memref<8x5xf32, #tpu.memory_space<vmem>>, vector<8x5xf32>,
    return
  }
  func.func @transform_0(%arg0: i32) -> (i32, i32) {
    %c0_i32 = arith.constant 0 : i32
    %c0_i32_0 = arith.constant 0 : i32
    %c0_i32_1 = arith.constant 0 : i32
    return %c0_i32, %c0_i32_0 : i32, i32
  }
  func.func @transform_1(%arg0: i32) -> (i32, i32) {
    %c0_i32 = arith.constant 0 : i32
    %c0_i32_0 = arith.constant 0 : i32
    %c0_i32_1 = arith.constant 0 : i32
    return %c0_i32, %c0_i32_0 : i32, i32
  }
  func.func @transform_2(%arg0: i32) -> (i32, i32) {
    %c0_i32 = arith.constant 0 : i32
    %c0_i32_0 = arith.constant 0 : i32
    %c0_i32_1 = arith.constant 0 : i32
    return %c0_i32, %c0_i32_0 : i32, i32
  }
  func.func @transform_3(%arg0: i32) -> (i32, i32) {
    %c0_i32 = arith.constant 0 : i32
    %c0_i32_0 = arith.constant 0 : i32
    %c0_i32_1 = arith.constant 0 : i32
    return %c0_i32, %c0_i32_0 : i32, i32
  }
  func.func @transform_4(%arg0: i32) -> (i32, i32) {
    %c0_i32 = arith.constant 0 : i32
    %c0_i32_0 = arith.constant 0 : i32
    return %arg0, %c0_i32 : i32, i32
  }
  func.func @transform_5(%arg0: i32) -> (i32, i32) {
    %c0_i32 = arith.constant 0 : i32
    %c0_i32_0 = arith.constant 0 : i32
    return %arg0, %c0_i32 : i32, i32
  }
  func.func @transform_6(%arg0: i32) -> (i32, i32) {
    %c0_i32 = arith.constant 0 : i32
    %c0_i32_0 = arith.constant 0 : i32
    return %arg0, %c0_i32 : i32, i32
  }
}

</mosaic_0001>

<llo_original>
// kernel: tpu_custom_call.1
$region0: #{tpu_custom_call.1}
  #allocation0 [shape = 'u32[]', space=smem, size = 0x4, offset = 0x4, fixed_abs, tag = 'smem constant byte address 0x4 - core index']
  #allocation1 [shape = 'u32[144,128]{1,0:T(1,128)}', space=vmem, size = 0x12000, scoped, tag = 'internal scratch']
  %s0 = inlined_call_operand.vmem [shape: f32[3,4], index: 0, kind: input, shape index: {}]
  %s1 = inlined_call_operand.vmem [shape: f32[1,4], index: 1, kind: input, shape index: {}]
  %s2 = inlined_call_operand.vmem [shape: f32[3,5], index: 2, kind: input, shape index: {}]
  %s3 = inlined_call_operand.vmem [shape: f32[1,5], index: 3, kind: input, shape index: {}]
  %s4 = inlined_call_operand.vmem [shape: f32[8,3], index: 4, kind: input, shape index: {}]
  %s5 = inlined_call_operand.vmem [shape: f32[8,4], index: 5, kind: output, shape index: {0}]
  %s6 = inlined_call_operand.hbm [shape: f32[8,5], index: 6, kind: output, shape index: {1}]
  %7 = xla_tuple %s5, %s6
  %s8 = sld [smem:[#allocation0]]
  $region38: #{tpu_custom_call.1} parent=0
    _
  %s10 = ssub.s32 1, %s8
  %s11 = scalar_select 0, %s10, %s8
  $region1: #{tpu_custom_call.1} parent=0
    #allocation2 [shape = 'u8[4096]{0}', space=vmem, size = 0x1000, scoped, tag = 'output window, operand 1, single buffered']
    #allocation3 [shape = 's32[1]{0}', space=sflag, size = 0x4, scoped, tag = 'scoped memory for tpu_custom_call.1']
    %12 = vsyncpa [#allocation3], 0
    // Predicated region
    $region2: #{tpu_custom_call.1} parent=1 // pred_check
      _
    $region3: #{tpu_custom_call.1} parent=1 // pred_check_branch
      %14 = sbr.rel (0) target = $region5
    $region4: #{tpu_custom_call.1} parent=1 // pred_region
      _
    $region5: #{tpu_custom_call.1} parent=1 // pred_fallthru
      _
    // Predicated region
    $region6: #{tpu_custom_call.1} parent=1 // pred_check
      _
    $region7: #{tpu_custom_call.1} parent=1 // pred_check_branch
      %16 = sbr.rel (0) target = $region9
    $region8: #{tpu_custom_call.1} parent=1 // pred_region
      _
    $region9: #{tpu_custom_call.1} parent=1 // pred_fallthru
      _
    // Predicated region
    $region10: #{tpu_custom_call.1} parent=1 // pred_check
      _
    $region11: #{tpu_custom_call.1} parent=1 // pred_check_branch
      %18 = sbr.rel (0) target = $region13
    $region12: #{tpu_custom_call.1} parent=1 // pred_region
      _
    $region13: #{tpu_custom_call.1} parent=1 // pred_fallthru
      _
    // Predicated region
    $region14: #{tpu_custom_call.1} parent=1 // pred_check
      _
    $region15: #{tpu_custom_call.1} parent=1 // pred_check_branch
      %20 = sbr.rel (0) target = $region17
    $region16: #{tpu_custom_call.1} parent=1 // pred_region
      _
    $region17: #{tpu_custom_call.1} parent=1 // pred_fallthru
      _
    // Predicated region
    $region18: #{tpu_custom_call.1} parent=1 // pred_check
      _
    $region19: #{tpu_custom_call.1} parent=1 // pred_check_branch
      %22 = sbr.rel (0) target = $region21
    $region20: #{tpu_custom_call.1} parent=1 // pred_region
      _
    $region21: #{tpu_custom_call.1} parent=1 // pred_fallthru
      _
    %v23 = vld [vmem:[%s4] sm:$0xff]
    %v24 = vld [vmem:[%s0] sm:$0x7]
    %v25 = vld [vmem:[%s1] sm:$0x1]
    %v27 = vlaneseq
    %v28 = vshrl.u32 %v27, 7
    %v29 = vsub.s32 0, %v28
    %v30 = vrot.slane %v25, %v29
    %vm32 = vcmask 23552
    %v34 = vsel %vm32, %v23, 0
    %vm36 = vcmask 1042432
    %v38 = vsel %vm36, %v24, 0
    %40 = vmatprep.subr.mxu0 0.0
    %41 = vmatpush1.msra.mxu0 %v38
    %42 = vmatprep.subr.mxu0 0.0
    %43 = vmatpush1.msra.mxu0 0.0
    %44 = vmatprep.subr.mxu0 0.0
    %45 = vmatpush1.msra.mxu0 0.0
    %46 = vmatprep.subr.mxu0 0.0
    %47 = vmatpush1.msra.mxu0 0.0
    %48 = vmatprep.subr.mxu0 0.0
    %49 = vmatpush1.msra.mxu0 0.0
    %50 = vmatprep.subr.mxu0 0.0
    %51 = vmatpush1.msra.mxu0 0.0
    %52 = vmatprep.subr.mxu0 0.0
    %53 = vmatpush1.msra.mxu0 0.0
    %54 = vmatprep.subr.mxu0 0.0
    %55 = vmatpush1.msra.mxu0 0.0
    %56 = vmatprep.subr.mxu0 0.0
    %57 = vmatpush1.msra.mxu0 0.0
    %58 = vmatprep.subr.mxu0 0.0
    %59 = vmatpush1.msra.mxu0 0.0
    %60 = vmatprep.subr.mxu0 0.0
    %61 = vmatpush1.msra.mxu0 0.0
    %62 = vmatprep.subr.mxu0 0.0
    %63 = vmatpush1.msra.mxu0 0.0
    %64 = vmatprep.subr.mxu0 0.0
    %65 = vmatpush1.msra.mxu0 0.0
    %66 = vmatprep.subr.mxu0 0.0
    %67 = vmatpush1.msra.mxu0 0.0
    %68 = vmatprep.subr.mxu0 0.0
    %69 = vmatpush1.msra.mxu0 0.0
    %70 = vmatprep.subr.mxu0 0.0
    %71 = vmatpush1.msra.mxu0 0.0
    %72 = vmatprep.subr.mxu0 0.0
    %73 = vmatpush1.msra.mxu0 0.0
    %74 = vmatprep.subr.mxu0 0.0
    %75 = vmatpush1.msra.mxu0 0.0
    %76 = vmatprep.subr.mxu0 0.0
    %77 = vmatpush1.msra.mxu0 0.0
    %78 = vmatprep.subr.mxu0 0.0
    %79 = vmatpush1.msra.mxu0 0.0
    %80 = vmatprep.subr.mxu0 0.0
    %81 = vmatpush1.msra.mxu0 0.0
    %82 = vmatprep.subr.mxu0 0.0
    %83 = vmatpush1.msra.mxu0 0.0
    %84 = vmatprep.subr.mxu0 0.0
    %85 = vmatpush1.msra.mxu0 0.0
    %86 = vmatprep.subr.mxu0 0.0
    %87 = vmatpush1.msra.mxu0 0.0
    %88 = vmatprep.subr.mxu0 0.0
    %89 = vmatpush1.msra.mxu0 0.0
    %90 = vmatprep.subr.mxu0 0.0
    %91 = vmatpush1.msra.mxu0 0.0
    %92 = vmatprep.subr.mxu0 0.0
    %93 = vmatpush1.msra.mxu0 0.0
    %94 = vmatprep.subr.mxu0 0.0
    %95 = vmatpush1.msra.mxu0 0.0
    %96 = vmatprep.subr.mxu0 0.0
    %97 = vmatpush1.msra.mxu0 0.0
    %98 = vmatprep.subr.mxu0 0.0
    %99 = vmatpush1.msra.mxu0 0.0
    %100 = vmatprep.subr.mxu0 0.0
    %101 = vmatpush1.msra.mxu0 0.0
    %102 = vmatprep.subr.mxu0 0.0
    %103 = vmatpush1.msra.mxu0 0.0
    %104 = vmatprep.mubr.f32.mxu0 0.0
    %105 = vmatmul.mubr.f32.gmra.mrb[0].mxu0 %v34
    %v106 = vpop.f32.mrb[0].mxu0
    %v107 = vadd.f32 %v30, %v106
    %v108 = vpop.f32.mrb[0].mxu0
    %109 = vdwg.mxu0
    %vm110 = vcmask 31744
    %111 = vst.msk [vmem:[%s5] sm:$0xff] %vm110, %v107
    %v112 = vld [vmem:[%s2] sm:$0x7]
    %v113 = vld [vmem:[%s3] sm:$0x1]
    %v115 = vlaneseq
    %v116 = vshrl.u32 %v115, 7
    %v117 = vsub.s32 0, %v116
    %v118 = vrot.slane %v113, %v117
    %v121 = vsel %vm36, %v112, 0
    %123 = vmatprep.subr.mxu0 0.0
    %124 = vmatpush1.msra.mxu0 %v121
    %125 = vmatprep.subr.mxu0 0.0
    %126 = vmatpush1.msra.mxu0 0.0
    %127 = vmatprep.subr.mxu0 0.0
    %128 = vmatpush1.msra.mxu0 0.0
    %129 = vmatprep.subr.mxu0 0.0
    %130 = vmatpush1.msra.mxu0 0.0
    %131 = vmatprep.subr.mxu0 0.0
    %132 = vmatpush1.msra.mxu0 0.0
    %133 = vmatprep.subr.mxu0 0.0
    %134 = vmatpush1.msra.mxu0 0.0
    %135 = vmatprep.subr.mxu0 0.0
    %136 = vmatpush1.msra.mxu0 0.0
    %137 = vmatprep.subr.mxu0 0.0
    %138 = vmatpush1.msra.mxu0 0.0
    %139 = vmatprep.subr.mxu0 0.0
    %140 = vmatpush1.msra.mxu0 0.0
    %141 = vmatprep.subr.mxu0 0.0
    %142 = vmatpush1.msra.mxu0 0.0
    %143 = vmatprep.subr.mxu0 0.0
    %144 = vmatpush1.msra.mxu0 0.0
    %145 = vmatprep.subr.mxu0 0.0
    %146 = vmatpush1.msra.mxu0 0.0
    %147 = vmatprep.subr.mxu0 0.0
    %148 = vmatpush1.msra.mxu0 0.0
    %149 = vmatprep.subr.mxu0 0.0
    %150 = vmatpush1.msra.mxu0 0.0
    %151 = vmatprep.subr.mxu0 0.0
    %152 = vmatpush1.msra.mxu0 0.0
    %153 = vmatprep.subr.mxu0 0.0
    %154 = vmatpush1.msra.mxu0 0.0
    %155 = vmatprep.subr.mxu0 0.0
    %156 = vmatpush1.msra.mxu0 0.0
    %157 = vmatprep.subr.mxu0 0.0
    %158 = vmatpush1.msra.mxu0 0.0
    %159 = vmatprep.subr.mxu0 0.0
    %160 = vmatpush1.msra.mxu0 0.0
    %161 = vmatprep.subr.mxu0 0.0
    %162 = vmatpush1.msra.mxu0 0.0
    %163 = vmatprep.subr.mxu0 0.0
    %164 = vmatpush1.msra.mxu0 0.0
    %165 = vmatprep.subr.mxu0 0.0
    %166 = vmatpush1.msra.mxu0 0.0
    %167 = vmatprep.subr.mxu0 0.0
    %168 = vmatpush1.msra.mxu0 0.0
    %169 = vmatprep.subr.mxu0 0.0
    %170 = vmatpush1.msra.mxu0 0.0
    %171 = vmatprep.subr.mxu0 0.0
    %172 = vmatpush1.msra.mxu0 0.0
    %173 = vmatprep.subr.mxu0 0.0
    %174 = vmatpush1.msra.mxu0 0.0
    %175 = vmatprep.subr.mxu0 0.0
    %176 = vmatpush1.msra.mxu0 0.0
    %177 = vmatprep.subr.mxu0 0.0
    %178 = vmatpush1.msra.mxu0 0.0
    %179 = vmatprep.subr.mxu0 0.0
    %180 = vmatpush1.msra.mxu0 0.0
    %181 = vmatprep.subr.mxu0 0.0
    %182 = vmatpush1.msra.mxu0 0.0
    %183 = vmatprep.subr.mxu0 0.0
    %184 = vmatpush1.msra.mxu0 0.0
    %185 = vmatprep.subr.mxu0 0.0
    %186 = vmatpush1.msra.mxu0 0.0
    %187 = vmatprep.mubr.f32.mxu0 0.0
    %188 = vmatmul.mubr.f32.gmra.mrb[0].mxu0 %v34
    %v189 = vpop.f32.mrb[0].mxu0
    %v190 = vadd.f32 %v118, %v189
    %v191 = vpop.f32.mrb[0].mxu0
    %192 = vdwg.mxu0
    %vm193 = vcmask 39936
    %194 = vst.msk [vmem:[#allocation2] sm:$0xff] %vm193, %v190
    // Predicated region
    $region22: #{tpu_custom_call.1} parent=1 // pred_check
      _
    $region23: #{tpu_custom_call.1} parent=1 // pred_check_branch
      %196 = sbr.rel (0) target = $region25
    $region24: #{tpu_custom_call.1} parent=1 // pred_region
      _
    $region25: #{tpu_custom_call.1} parent=1 // pred_fallthru
      _
    // Predicated region
    $region26: #{tpu_custom_call.1} parent=1 // pred_check
      _
    $region27: #{tpu_custom_call.1} parent=1 // pred_check_branch
      %198 = sbr.rel (0) target = $region29
    $region28: #{tpu_custom_call.1} parent=1 // pred_region
      %s200 = ssub.s32 128, 128
      %201 = vsyncadd [#allocation3], %s200
      %s203 = sshll.u32 [#allocation2], 4
      %s204 = int_to_ptr.vmem [resolvable:$true] %s203
      %206 = dma.vmem_to_hbm [thread:$0]  %s204, 128, %s6, [#allocation3]
    $region29: #{tpu_custom_call.1} parent=1 // pred_fallthru
      _
    // Predicated region
    $region30: #{tpu_custom_call.1} parent=1 // pred_check
      _
    $region31: #{tpu_custom_call.1} parent=1 // pred_check_branch
      %208 = sbr.rel (0) target = $region33
    $region32: #{tpu_custom_call.1} parent=1 // pred_region
      _
    $region33: #{tpu_custom_call.1} parent=1 // pred_fallthru
      _
    // Predicated region
    $region34: #{tpu_custom_call.1} parent=1 // pred_check
      _
    $region35: #{tpu_custom_call.1} parent=1 // pred_check_branch
      %210 = sbr.rel (0) target = $region37
    $region36: #{tpu_custom_call.1} parent=1 // pred_region
      %211 = dma.done [#allocation3], 128
    $region37: #{tpu_custom_call.1} parent=1 // pred_fallthru
      _
    %212 = vsyncpa [#allocation3], 1

</llo_original>
